<compile_context>
chip_gen: v7x
topology: tpu7x:2x2x1
jax: 0.10.0
libtpu: 0.0.40
codegen_flags: <defaults>
</compile_context>

<pallas_src>
import functools

import jax
import jax.numpy as jnp
from jax.experimental import pallas as pl
from jax.experimental.pallas import tpu as pltpu


def _round_up(x: int, m: int) -> int:
    return ((x + m - 1) // m) * m


def _warp_loss_kernel(pos_ref, neg_ref, out_ref, acc_ref, *,
                      valid_b, valid_n, mask_b, mask_n):
    bi = pl.program_id(0)
    ni = pl.program_id(1)  # reduction axis (last grid axis)
    TB, TN = neg_ref.shape

    @pl.when(ni == 0)
    def _init():
        acc_ref[...] = jnp.zeros_like(acc_ref)

    # Upcast in-kernel (VPU cast) so bf16 inputs stay bf16 over HBM.
    pos = pos_ref[...].astype(jnp.float32)          # (TB, 1)
    neg = neg_ref[...].astype(jnp.float32)          # (TB, TN)
    x = neg - pos                                   # lane broadcast

    # Stable softplus: log(1 + exp(x)) == max(x, 0) + log1p(exp(-|x|)).
    # Two EUP ops/element (the critical slot); the extra abs/max are VALU
    # ops with slack.  Padded entries (x ~ -1e30) contribute exactly 0.
    sp = jnp.maximum(x, 0.0) + jnp.log1p(jnp.exp(-jnp.abs(x)))

    # Mask ragged tail tiles (only compiled in when statically needed).
    if mask_b or mask_n:
        ok = None
        if mask_n:
            col = jax.lax.broadcasted_iota(jnp.int32, (1, TN), 1) + ni * TN
            ok = col < valid_n
        if mask_b:
            row = jax.lax.broadcasted_iota(jnp.int32, (TB, 1), 0) + bi * TB
            okb = row < valid_b
            ok = okb if ok is None else (ok & okb)
        sp = jnp.where(ok, sp, 0.0)

    # Layout-free leading split (groups of 8 rows == sublane tiles), then a
    # pure-VALU reduction into the tiny (8, TN) accumulator.
    acc_ref[...] += sp.reshape(TB // 8, 8, TN).sum(axis=0)

    @pl.when(ni == pl.num_programs(1) - 1)
    def _finalize():
        # Fold TN//128 lane tiles with static slices (no relayout), once per
        # B-tile.  Output block stays lane-dense (8, 128); the final scalar
        # reduce happens in the wrapper.
        folded = acc_ref[:, 0:128]
        for t in range(1, TN // 128):
            folded = folded + acc_ref[:, t * 128:(t + 1) * 128]
        out_ref[...] = folded.reshape(1, 8, 128)


def warp_loss(pos_scores: jax.Array, neg_scores: jax.Array,
              *, tb: int = 512, tn: int = 2048) -> jax.Array:
    """pos_scores: (B,) or (B,1); neg_scores: (B, N). Returns scalar f32 loss."""
    B, N = neg_scores.shape
    pos2d = pos_scores.reshape(B, 1)
    neg2d = neg_scores

    # Cheap alignment pad ONLY for sub-tile-unit dims (tiny arrays).  Large
    # ragged arrays are handled by in-kernel masking (no full HBM copy).
    Bp = B if B >= 8 else 8
    Np = N if N >= 128 else 128
    if (Bp, Np) != (B, N):
        # -1e30 padding => softplus contributes exactly 0 for padded entries.
        neg2d = jnp.pad(neg2d, ((0, Bp - B), (0, Np - N)),
                        constant_values=-1e30)
        if Bp != B:
            pos2d = jnp.pad(pos2d, ((0, Bp - B), (0, 0)))

    # Tile sizes: multiples of (8, 128) that never start out of bounds.
    TN = min(tn, 128 * (Np // 128))
    TB = min(tb, 8 * (Bp // 8))
    nb = pl.cdiv(Bp, TB)
    nn = pl.cdiv(Np, TN)

    # v7x: make sure both TensorCores get a B-tile when B allows it
    # (harmless extra finalize on single-TC v5e/v6e).
    if nb == 1 and Bp >= 16:
        TB = _round_up(pl.cdiv(Bp, 2), 8)
        nb = pl.cdiv(Bp, TB)

    # Masking is only needed where the grid covers garbage beyond the array.
    mask_n = (nn * TN) > Np
    mask_b = (nb * TB) > Bp

    kernel = functools.partial(
        _warp_loss_kernel,
        valid_b=B, valid_n=N, mask_b=mask_b, mask_n=mask_n)

    partials = pl.pallas_call(
        kernel,
        out_shape=jax.ShapeDtypeStruct((nb, 8, 128), jnp.float32),
        grid_spec=pltpu.PrefetchScalarGridSpec(
            num_scalar_prefetch=0,
            grid=(nb, nn),  # N (reduction) axis last
            in_specs=[
                pl.BlockSpec((TB, 1), lambda bi, ni: (bi, 0)),
                pl.BlockSpec((TB, TN), lambda bi, ni: (bi, ni)),
            ],
            out_specs=pl.BlockSpec((1, 8, 128), lambda bi, ni: (bi, 0, 0)),
            scratch_shapes=[pltpu.VMEM((8, TN), jnp.float32)],
        ),
        compiler_params=pltpu.CompilerParams(
            dimension_semantics=("parallel", "arbitrary"),
            vmem_limit_bytes=32 * 1024 * 1024,
        ),
    )(pos2d, neg2d)

    # Per-B-tile lane-dense partial blocks; final reduce + mean in the wrapper.
    return jnp.sum(partials) / jnp.float32(B)


def warp_loss_ref(pos_scores, neg_scores):
    pos = pos_scores.reshape(-1, 1).astype(jnp.float32)
    neg = neg_scores.astype(jnp.float32)
    return jnp.sum(jnp.mean(jnp.log(1.0 + jnp.exp(neg - pos)), axis=0))


if __name__ == "__main__":
    key = jax.random.PRNGKey(0)
    k1, k2, k3, k4, k5, k6 = jax.random.split(key, 6)

    # Primary small test (aligned with the module's expected shapes).
    B, N = 8, 16
    pos_scores = jax.random.normal(k1, (B,), dtype=jnp.float32)
    neg_scores = jax.random.normal(k2, (B, N), dtype=jnp.float32)
    loss = warp_loss(pos_scores, neg_scores)
    jax.block_until_ready(loss)
    ref = warp_loss_ref(pos_scores, neg_scores)
    assert jnp.allclose(loss, ref, rtol=1e-5, atol=1e-5), (loss, ref)

    # Second test: tiny non-aligned shapes (exercises the cheap-pad path).
    B2, N2 = 6, 10
    pos2 = jax.random.normal(k3, (B2,), dtype=jnp.float32)
    neg2 = jax.random.normal(k4, (B2, N2), dtype=jnp.float32)
    loss2 = warp_loss(pos2, neg2)
    jax.block_until_ready(loss2)
    ref2 = warp_loss_ref(pos2, neg2)
    assert jnp.allclose(loss2, ref2, rtol=1e-5, atol=1e-5), (loss2, ref2)

    # Third test: ragged multi-tile shapes (exercises in-kernel masking,
    # partial trailing blocks and the 2-way B split -- no jnp.pad copy).
    B3, N3 = 24, 300
    pos3 = jax.random.normal(k5, (B3,), dtype=jnp.float32)
    neg3 = jax.random.normal(k6, (B3, N3), dtype=jnp.float32)
    loss3 = warp_loss(pos3, neg3)
    jax.block_until_ready(loss3)
    ref3 = warp_loss_ref(pos3, neg3)
    assert jnp.allclose(loss3, ref3, rtol=1e-5, atol=1e-5), (loss3, ref3)

    print("KERNEL_OK")
</pallas_src>

<mosaic_0001>
module attributes {stable_mosaic.version = 11 : i64} {
  func.func @_warp_loss_kernel(%arg0: i32, %arg1: i32, %arg2: memref<8x1xf32, #tpu.memory_space<vmem>>, %arg3: memref<8x128xf32, #tpu.memory_space<vmem>>, %arg4: memref<1x8x128xf32, #tpu.memory_space<vmem>>, %arg5: memref<8x128xf32, #tpu.memory_space<vmem>>) attributes {dimension_semantics = [#tpu.dimension_semantics<parallel>, #tpu.dimension_semantics<arbitrary>], iteration_bounds = array<i64: 1, 1>, scalar_prefetch = 0 : i64, scratch_operands = 1 : i64, tpu.core_type = #tpu.core_type<tc>, window_params = [{transform_indices = @transform_0, window_bounds = array<i64: 8, 1>}, {transform_indices = @transform_1, window_bounds = array<i64: 8, 128>}, {transform_indices = @transform_2, window_bounds = array<i64: 1, 8, 128>}]} {
    %c0_i32 = arith.constant 0 : i32
    %0 = arith.cmpi eq, %arg1, %c0_i32 : i32
    %1 = arith.extui %0 : i1 to i32
    %c0_i32_0 = arith.constant 0 : i32
    %2 = arith.cmpi ne, %1, %c0_i32_0 : i32
    scf.if %2 {
      %cst_12 = arith.constant 0.000000e+00 : f32
      %23 = vector.broadcast %cst_12 : f32 to vector<8x128xf32>
      %c0_13 = arith.constant 0 : index
      %c0_14 = arith.constant 0 : index
      %24 = vector.load %arg5[%c0_13, %c0_14] : memref<8x128xf32, #tpu.memory_space<vmem>>, vector<8x128xf32>
      tpu.vector_store %arg5[%c0_13, %c0_14], %23 {strides = array<i32>} : memref<8x128xf32, #tpu.memory_space<vmem>>, vector<8x128xf32>,
    } else {
    }
    %c0 = arith.constant 0 : index
    %c0_1 = arith.constant 0 : index
    %3 = vector.load %arg2[%c0, %c0_1] : memref<8x1xf32, #tpu.memory_space<vmem>>, vector<8x1xf32>
    %c0_2 = arith.constant 0 : index
    %c0_3 = arith.constant 0 : index
    %4 = vector.load %arg3[%c0_2, %c0_3] : memref<8x128xf32, #tpu.memory_space<vmem>>, vector<8x128xf32>
    %5 = vector.broadcast %3 : vector<8x1xf32> to vector<8x128xf32>
    %6 = arith.subf %4, %5 : vector<8x128xf32>
    %cst = arith.constant 0.000000e+00 : f32
    %7 = vector.broadcast %cst : f32 to vector<8x128xf32>
    %8 = arith.maximumf %6, %7 : vector<8x128xf32>
    %9 = math.absf %6 : vector<8x128xf32>
    %cst_4 = arith.constant 0.000000e+00 : f32
    %10 = vector.broadcast %cst_4 : f32 to vector<8x128xf32>
    %11 = arith.subf %10, %9 : vector<8x128xf32>
    %12 = math.exp %11 : vector<8x128xf32>
    %13 = math.log1p %12 : vector<8x128xf32>
    %14 = arith.addf %8, %13 : vector<8x128xf32>
    %c0_5 = arith.constant 0 : index
    %c0_6 = arith.constant 0 : index
    %15 = vector.load %arg5[%c0_5, %c0_6] : memref<8x128xf32, #tpu.memory_space<vmem>>, vector<8x128xf32>
    %16 = vector.shape_cast %14 : vector<8x128xf32> to vector<1x8x128xf32>
    %cst_7 = arith.constant dense<0.000000e+00> : vector<8x128xf32>
    %17 = vector.multi_reduction <add>, %16, %cst_7 [0] : vector<1x8x128xf32> to vector<8x128xf32>
    %18 = arith.addf %15, %17 : vector<8x128xf32>
    %c0_8 = arith.constant 0 : index
    %c0_9 = arith.constant 0 : index
    %19 = vector.load %arg5[%c0_8, %c0_9] : memref<8x128xf32, #tpu.memory_space<vmem>>, vector<8x128xf32>
    tpu.vector_store %arg5[%c0_8, %c0_9], %18 {strides = array<i32>} : memref<8x128xf32, #tpu.memory_space<vmem>>, vector<8x128xf32>,
    %c0_i32_10 = arith.constant 0 : i32
    %20 = arith.cmpi eq, %arg1, %c0_i32_10 : i32
    %21 = arith.extui %20 : i1 to i32
    %c0_i32_11 = arith.constant 0 : i32
    %22 = arith.cmpi ne, %21, %c0_i32_11 : i32
    scf.if %22 {
      %c0_12 = arith.constant 0 : index
      %c0_13 = arith.constant 0 : index
      %23 = vector.load %arg5[%c0_12, %c0_13] : memref<8x128xf32, #tpu.memory_space<vmem>>, vector<8x128xf32>
      %24 = vector.shape_cast %23 : vector<8x128xf32> to vector<1x8x128xf32>
      %c0_14 = arith.constant 0 : index
      %c0_15 = arith.constant 0 : index
      %c0_16 = arith.constant 0 : index
      %25 = vector.load %arg4[%c0_14, %c0_15, %c0_16] : memref<1x8x128xf32, #tpu.memory_space<vmem>>, vector<1x8x128xf32>
      tpu.vector_store %arg4[%c0_14, %c0_15, %c0_16], %24 {strides = array<i32>} : memref<1x8x128xf32, #tpu.memory_space<vmem>>, vector<1x8x128xf32>,
    } else {
    }
    return
  }
  func.func @transform_0(%arg0: i32, %arg1: i32) -> (i32, i32) {
    %c0_i32 = arith.constant 0 : i32
    %c0_i32_0 = arith.constant 0 : i32
    return %arg0, %c0_i32 : i32, i32
  }
  func.func @transform_1(%arg0: i32, %arg1: i32) -> (i32, i32) {
    %c0_i32 = arith.constant 0 : i32
    return %arg0, %arg1 : i32, i32
  }
  func.func @transform_2(%arg0: i32, %arg1: i32) -> (i32, i32, i32) {
    %c0_i32 = arith.constant 0 : i32
    %c0_i32_0 = arith.constant 0 : i32
    %c0_i32_1 = arith.constant 0 : i32
    return %arg0, %c0_i32, %c0_i32_0 : i32, i32, i32
  }
}

</mosaic_0001>

<llo_original>
// kernel: tpu_custom_call.1
$region0: #{tpu_custom_call.1}
  #allocation0 [shape = 'u32[]', space=smem, size = 0x4, offset = 0x4, fixed_abs, tag = 'smem constant byte address 0x4 - core index']
  #allocation1 [shape = 'u32[144,128]{1,0:T(1,128)}', space=vmem, size = 0x12000, scoped, tag = 'internal scratch']
  #allocation2 [shape = 'f32[8,128]{1,0:T(8,128)}', space=vmem, size = 0x1000, scoped, tag = 'scratch operand']
  %s0 = inlined_call_operand.vmem [shape: f32[8,1], index: 0, kind: input, shape index: {}]
  %s1 = inlined_call_operand.vmem [shape: f32[8,128], index: 1, kind: input, shape index: {}]
  %s2 = inlined_call_operand.hbm [shape: f32[1,8,128], index: 2, kind: output, shape index: {}]
  %s3 = sld [smem:[#allocation0]]
  $region26: #{tpu_custom_call.1} parent=0
    _
  %s5 = ssub.s32 1, %s3
  %s6 = scalar_select 0, %s5, %s3
  $region1: #{tpu_custom_call.1} parent=0
    #allocation3 [shape = 'u8[4096]{0}', space=vmem, size = 0x1000, scoped, tag = 'output window, operand 0, single buffered']
    #allocation4 [shape = 's32[1]{0}', space=sflag, size = 0x4, scoped, tag = 'scoped memory for tpu_custom_call.1']
    %7 = vsyncpa [#allocation4], 0
    // Predicated region
    $region2: #{tpu_custom_call.1} parent=1 // pred_check
      _
    $region3: #{tpu_custom_call.1} parent=1 // pred_check_branch
      %9 = sbr.rel (0) target = $region5
    $region4: #{tpu_custom_call.1} parent=1 // pred_region
      _
    $region5: #{tpu_custom_call.1} parent=1 // pred_fallthru
      _
    // Predicated region
    $region6: #{tpu_custom_call.1} parent=1 // pred_check
      _
    $region7: #{tpu_custom_call.1} parent=1 // pred_check_branch
      %11 = sbr.rel (0) target = $region9
    $region8: #{tpu_custom_call.1} parent=1 // pred_region
      _
    $region9: #{tpu_custom_call.1} parent=1 // pred_fallthru
      _
    %p12 = scmp.eq.s32.totalorder 0, 0
    // Predicated region
    $region10: #{tpu_custom_call.1} parent=1 // pred_check
      %p13 = pneg %p12
    $region11: #{tpu_custom_call.1} parent=1 // pred_check_branch
      %15 = sbr.rel (%p13) target = $region13
    $region12: #{tpu_custom_call.1} parent=1 // pred_region
      %16 = vst [vmem:[#allocation2] sm:$0xff] 0.0
    $region13: #{tpu_custom_call.1} parent=1 // pred_fallthru
      _
    %v17 = vld [vmem:[%s0] sm:$0xff]
    %v18 = vld [vmem:[%s1] sm:$0xff]
    %20 = vset.pattern.permute.xlu0 0
    %21 = vperm.xlu0 %20, %v17
    %v22 = vpop.permute.xlu0 %21
    %v24 = vsub.f32 %v18, %v22
    %v25 = vmax.f32 %v24, 0.0
    %v26 = vand.u32 2147483647, %v24
    %v27 = vsub.f32 0.0, %v26
    %v28 = vmul.f32 %v27, 1.442695
    %v29 = vpow.pop %v28
    %v30 = vadd.f32 %v29, 1.0
    %v31 = vlog2.pop %v30
    %v32 = vmul.f32 %v31, 0.6931472
    %v33 = vmul.f32 -0.5, %v29
    %v34 = vadd.f32 %v33, 1.0
    %v35 = vmul.f32 %v34, %v29
    %v36 = vand.u32 2147483647, %v29
    %vm37 = vcmp.lt.f32.partialorder %v36, 0.0004427343
    %v38 = vsel %vm37, %v35, %v32
    %v39 = vadd.f32 %v25, %v38
    %v40 = vld [vmem:[#allocation2] sm:$0xff]
    %v41 = vadd.f32 %v39, 0.0
    %v42 = vadd.f32 %v40, %v41
    %43 = vst [vmem:[#allocation2] sm:$0xff] %v42
    // Predicated region
    $region14: #{tpu_custom_call.1} parent=1 // pred_check
      %p44 = pneg %p12
    $region15: #{tpu_custom_call.1} parent=1 // pred_check_branch
      %46 = sbr.rel (%p44) target = $region17
    $region16: #{tpu_custom_call.1} parent=1 // pred_region
      %v47 = vld [vmem:[#allocation2] sm:$0xff]
      %48 = vst [vmem:[#allocation3] sm:$0xff] %v47
    $region17: #{tpu_custom_call.1} parent=1 // pred_fallthru
      _
    // Predicated region
    $region18: #{tpu_custom_call.1} parent=1 // pred_check
      _
    $region19: #{tpu_custom_call.1} parent=1 // pred_check_branch
      %50 = sbr.rel (0) target = $region21
    $region20: #{tpu_custom_call.1} parent=1 // pred_region
      %s52 = ssub.s32 128, 128
      %53 = vsyncadd [#allocation4], %s52
      %s55 = sshll.u32 [#allocation3], 4
      %s56 = int_to_ptr.vmem [resolvable:$true] %s55
      %58 = dma.vmem_to_hbm [thread:$0]  %s56, 128, %s2, [#allocation4]
    $region21: #{tpu_custom_call.1} parent=1 // pred_fallthru
      _
    // Predicated region
    $region22: #{tpu_custom_call.1} parent=1 // pred_check
      _
    $region23: #{tpu_custom_call.1} parent=1 // pred_check_branch
      %60 = sbr.rel (0) target = $region25
    $region24: #{tpu_custom_call.1} parent=1 // pred_region
      %61 = dma.done [#allocation4], 128
    $region25: #{tpu_custom_call.1} parent=1 // pred_fallthru
      _
    %62 = vsyncpa [#allocation4], 1

</llo_original>
